<compile_context>
chip_gen: v7x
topology: tpu7x:2x2x1
jax: 0.10.0
libtpu: 0.0.40
codegen_flags: <defaults>
</compile_context>

<pallas_src>
import functools

import jax
import jax.numpy as jnp
from jax import lax
from jax.experimental import pallas as pl
from jax.experimental.pallas import tpu as pltpu


def _round_up(x, m):
    return ((x + m - 1) // m) * m


def _pad2(a, rows, cols):
    """Zero-pad a 2-D array up to (rows, cols); no-op if already that shape."""
    r, c = a.shape
    if r == rows and c == cols:
        return a
    return jnp.pad(a, ((0, rows - r), (0, cols - c)))


def _masked_linear_kernel(*refs, has_cond):
    """One (tm, tn) output tile; whole (padded) K contracted in a single pass.

    refs (has_cond=True):  x, w, mask, cond_x, cond_w, bias, out
    refs (has_cond=False): x, w, mask, bias, out

      x:      (tm, Kp)   activations
      w:      (tn, Kp)   weight, PyTorch (out, in) layout
      mask:   (tn, Kp)   MADE mask (int8/bool recommended), folded on the VPU
      cond_x: (tm, Kcp)  conditional activations
      cond_w: (tn, Kcp)  conditional weight
      bias:   (1,  tn)   f32 bias
      out:    (tm, tn)   output tile
    """
    if has_cond:
        x_ref, w_ref, m_ref, cx_ref, cw_ref, b_ref, o_ref = refs
    else:
        x_ref, w_ref, m_ref, b_ref, o_ref = refs

    w = w_ref[...]
    wm = w * m_ref[...].astype(w.dtype)          # in-kernel mask fold (VPU, free
                                                 # filler under the weight DMA)
    acc = lax.dot_general(                       # x @ (W*mask).T on the MXU
        x_ref[...], wm,
        dimension_numbers=(((1,), (1,)), ((), ())),
        preferred_element_type=jnp.float32,
    )
    if has_cond:
        acc = acc + lax.dot_general(             # + cond_x @ W_cond.T
            cx_ref[...], cw_ref[...],
            dimension_numbers=(((1,), (1,)), ((), ())),
            preferred_element_type=jnp.float32,
        )
    o_ref[...] = (acc + b_ref[...].astype(jnp.float32)).astype(o_ref.dtype)


def masked_linear(inputs, weight, mask, bias=None, cond_weight=None,
                  cond_inputs=None, *, compute_dtype=None):
    """Pallas implementation of MaskedLinear.forward.

    inputs:      (B, in_features)
    weight:      (out_features, in_features)
    mask:        (out_features, in_features)  -- binary MADE mask; pass it as
                 int8 / bool to minimize HBM traffic (it is streamed as-is).
    bias:        (out_features,) or None
    cond_weight: (out_features, cond_in_features) or None
    cond_inputs: (B, cond_in_features) or None
    compute_dtype: optional MXU input dtype (e.g. jnp.bfloat16); accumulation
                   stays f32 (note: bf16 will not pass 1e-4 exactness checks).
    """
    B, in_f = inputs.shape
    out_f = weight.shape[0]
    out_dtype = inputs.dtype
    has_cond = cond_inputs is not None
    if has_cond and cond_weight is None:
        raise ValueError("cond_inputs given but cond_weight is None")

    cdtype = jnp.dtype(compute_dtype) if compute_dtype is not None else jnp.dtype(inputs.dtype)
    itemsize = cdtype.itemsize

    # ---- Tile sizing --------------------------------------------------------
    # M: round the batch to the packed-sublane count of the compute dtype.
    sub = {4: 8, 2: 16, 1: 32}.get(itemsize, 8)
    Mp = _round_up(B, sub)
    if Mp > 256:
        Mp = _round_up(Mp, 256)
        tm = 256
    else:
        tm = Mp
    gi = Mp // tm

    # K: collapsed into a single block (one MXU pass per tile, no accumulator).
    Kp = _round_up(in_f, 128)
    Kcp = _round_up(cond_inputs.shape[1], 128) if has_cond else 0
    # TODO(synk): K-grid fallback with an f32 accumulator for in_features >~ 8K.

    # N: 128-aligned; prefer tn=256 (v6e/v7x 256-wide MXU) but keep >= 2
    # parallel grid blocks when possible so v7x's two TensorCores both get work.
    Np = _round_up(out_f, 128)
    tn = 256 if Np % 256 == 0 else 128
    if gi == 1 and tn == 256 and Np // tn == 1:
        tn = 128
    gj = Np // tn

    # VMEM footprint (double-buffered pipeline stages); shrink tn if needed.
    mask_isz = jnp.dtype(mask.dtype).itemsize

    def _footprint(tm_, tn_):
        b = (tm_ * Kp + tn_ * Kp + tm_ * tn_) * itemsize + tn_ * Kp * mask_isz
        if has_cond:
            b += (tm_ * Kcp + tn_ * Kcp) * itemsize
        b += tn_ * 4
        return 2 * b

    if tn > 128 and _footprint(tm, tn) > 24 * (1 << 20):
        tn = 128
        gj = Np // tn
    vmem_limit = int(min(40 << 20, max(32 << 20, 2 * _footprint(tm, tn))))

    # ---- Operand prep (already tile-aligned arrays are passed through) ------
    x = _pad2(inputs, Mp, Kp)
    w = _pad2(weight, Np, Kp)
    m = _pad2(mask, Np, Kp)
    if bias is None:
        bias = jnp.zeros((out_f,), jnp.float32)
    b2 = _pad2(bias.astype(jnp.float32).reshape(1, out_f), 1, Np)

    if compute_dtype is not None:
        x = x.astype(cdtype)
        w = w.astype(cdtype)

    operands = [x, w, m]
    in_specs = [
        pl.BlockSpec((tm, Kp), lambda i, j: (i, 0)),    # activations
        pl.BlockSpec((tn, Kp), lambda i, j: (j, 0)),    # weight (out, in)
        pl.BlockSpec((tn, Kp), lambda i, j: (j, 0)),    # MADE mask (int8/bool)
    ]
    if has_cond:
        cx = _pad2(cond_inputs, Mp, Kcp)
        cw = _pad2(cond_weight, Np, Kcp)
        if compute_dtype is not None:
            cx = cx.astype(cdtype)
            cw = cw.astype(cdtype)
        operands += [cx, cw]
        in_specs += [
            pl.BlockSpec((tm, Kcp), lambda i, j: (i, 0)),   # cond activations
            pl.BlockSpec((tn, Kcp), lambda i, j: (j, 0)),   # cond weight
        ]
    operands.append(b2)
    in_specs.append(pl.BlockSpec((1, tn), lambda i, j: (0, j)))  # bias

    out = pl.pallas_call(
        functools.partial(_masked_linear_kernel, has_cond=has_cond),
        out_shape=jax.ShapeDtypeStruct((Mp, Np), out_dtype),
        grid_spec=pltpu.PrefetchScalarGridSpec(
            num_scalar_prefetch=0,
            grid=(gi, gj),
            in_specs=in_specs,
            out_specs=pl.BlockSpec((tm, tn), lambda i, j: (i, j)),
        ),
        compiler_params=pltpu.CompilerParams(
            dimension_semantics=("parallel", "parallel"),
            vmem_limit_bytes=vmem_limit,
        ),
    )(*operands)

    return out[:B, :out_f]


def _init_linear_params(key, out_features, in_features, bias=True):
    """Deterministic nn.Linear-style init: U(-1/sqrt(in), 1/sqrt(in))."""
    kw, kb = jax.random.split(key)
    bound = 1.0 / jnp.sqrt(jnp.float32(in_features))
    w = jax.random.uniform(kw, (out_features, in_features), jnp.float32,
                           minval=-bound, maxval=bound)
    b = None
    if bias:
        b = jax.random.uniform(kb, (out_features,), jnp.float32,
                               minval=-bound, maxval=bound)
    return w, b


def _made_mask(out_features, in_features):
    """Binary MADE degree mask, stored as int8 (quarter the HBM bytes of f32)."""
    in_deg = jnp.arange(in_features) % (in_features - 1)
    out_deg = jnp.arange(out_features) % (in_features - 1)
    return (out_deg[:, None] >= in_deg[None, :]).astype(jnp.int8)


if __name__ == "__main__":
    # --- Small shapes consistent with a MADE coupling layer ---
    B, in_features, out_features, cond_in_features = 8, 32, 32, 16

    key = jax.random.PRNGKey(0)
    k_x, k_c, k_lin, k_cond = jax.random.split(key, 4)

    x = jax.random.normal(k_x, (B, in_features), jnp.float32)
    cond = jax.random.normal(k_c, (B, cond_in_features), jnp.float32)
    weight, bias = _init_linear_params(k_lin, out_features, in_features, bias=True)
    cond_weight, _ = _init_linear_params(k_cond, out_features, cond_in_features,
                                         bias=False)
    mask = _made_mask(out_features, in_features)

    out = jax.block_until_ready(masked_linear(x, weight, mask, bias,
                                              cond_weight, cond))
    ref = x @ (weight * mask).T + bias[None, :] + cond @ cond_weight.T
    assert jnp.allclose(out, ref, atol=1e-4, rtol=1e-4), "mismatch vs reference (cond)"

    out_nc = jax.block_until_ready(masked_linear(x, weight, mask, bias))
    ref_nc = x @ (weight * mask).T + bias[None, :]
    assert jnp.allclose(out_nc, ref_nc, atol=1e-4, rtol=1e-4), "mismatch (no cond)"

    # --- Larger, 128-aligned shapes: weight/mask hit the kernel untouched and
    #     the j (out_features) axis has several parallel blocks.
    B2, in2, out2, cond2 = 16, 512, 384, 64
    k_x2, k_c2, k_lin2, k_cond2 = jax.random.split(jax.random.PRNGKey(1), 4)
    x2 = jax.random.normal(k_x2, (B2, in2), jnp.float32)
    c2 = jax.random.normal(k_c2, (B2, cond2), jnp.float32)
    w2, b2 = _init_linear_params(k_lin2, out2, in2, bias=True)
    cw2, _ = _init_linear_params(k_cond2, out2, cond2, bias=False)
    m2 = _made_mask(out2, in2)

    out2v = jax.block_until_ready(masked_linear(x2, w2, m2, b2, cw2, c2))
    ref2 = x2 @ (w2 * m2).T + b2[None, :] + c2 @ cw2.T
    assert jnp.allclose(out2v, ref2, atol=1e-3, rtol=1e-3), "mismatch (aligned path)"

    print("KERNEL_OK")
</pallas_src>

<mosaic_0001>
module attributes {stable_mosaic.version = 11 : i64} {
  func.func @_masked_linear_kernel(%arg0: i32, %arg1: i32, %arg2: memref<8x128xf32, #tpu.memory_space<vmem>>, %arg3: memref<128x128xf32, #tpu.memory_space<vmem>>, %arg4: memref<128x128xi8, #tpu.memory_space<vmem>>, %arg5: memref<8x128xf32, #tpu.memory_space<vmem>>, %arg6: memref<128x128xf32, #tpu.memory_space<vmem>>, %arg7: memref<1x128xf32, #tpu.memory_space<vmem>>, %arg8: memref<8x128xf32, #tpu.memory_space<vmem>>) attributes {dimension_semantics = [#tpu.dimension_semantics<parallel>, #tpu.dimension_semantics<parallel>], iteration_bounds = array<i64: 1, 1>, scalar_prefetch = 0 : i64, scratch_operands = 0 : i64, tpu.core_type = #tpu.core_type<tc>, window_params = [{transform_indices = @transform_0, window_bounds = array<i64: 8, 128>}, {transform_indices = @transform_1, window_bounds = array<i64: 128, 128>}, {transform_indices = @transform_2, window_bounds = array<i64: 128, 128>}, {transform_indices = @transform_3, window_bounds = array<i64: 8, 128>}, {transform_indices = @transform_4, window_bounds = array<i64: 128, 128>}, {transform_indices = @transform_5, window_bounds = array<i64: 1, 128>}, {transform_indices = @transform_6, window_bounds = array<i64: 8, 128>}]} {
    %c0 = arith.constant 0 : index
    %c0_0 = arith.constant 0 : index
    %0 = vector.load %arg3[%c0, %c0_0] : memref<128x128xf32, #tpu.memory_space<vmem>>, vector<128x128xf32>
    %c0_1 = arith.constant 0 : index
    %c0_2 = arith.constant 0 : index
    %1 = vector.load %arg4[%c0_1, %c0_2] : memref<128x128xi8, #tpu.memory_space<vmem>>, vector<128x128xi8>
    %2 = arith.sitofp %1 : vector<128x128xi8> to vector<128x128xf32>
    %3 = arith.mulf %0, %2 : vector<128x128xf32>
    %c0_3 = arith.constant 0 : index
    %c0_4 = arith.constant 0 : index
    %4 = vector.load %arg2[%c0_3, %c0_4] : memref<8x128xf32, #tpu.memory_space<vmem>>, vector<8x128xf32>
    %cst = arith.constant dense<0.000000e+00> : vector<8x128xf32>
    %5 = tpu.matmul %4, %3, %cst {dimension_numbers = #tpu.dot_dimension_numbers<[1], [1], [0], [0], [0, 0, 1, 0], [], []>} : vector<8x128xf32>, vector<128x128xf32>, vector<8x128xf32> -> vector<8x128xf32>
    %c0_5 = arith.constant 0 : index
    %c0_6 = arith.constant 0 : index
    %6 = vector.load %arg5[%c0_5, %c0_6] : memref<8x128xf32, #tpu.memory_space<vmem>>, vector<8x128xf32>
    %c0_7 = arith.constant 0 : index
    %c0_8 = arith.constant 0 : index
    %7 = vector.load %arg6[%c0_7, %c0_8] : memref<128x128xf32, #tpu.memory_space<vmem>>, vector<128x128xf32>
    %cst_9 = arith.constant dense<0.000000e+00> : vector<8x128xf32>
    %8 = tpu.matmul %6, %7, %cst_9 {dimension_numbers = #tpu.dot_dimension_numbers<[1], [1], [0], [0], [0, 0, 1, 0], [], []>} : vector<8x128xf32>, vector<128x128xf32>, vector<8x128xf32> -> vector<8x128xf32>
    %9 = arith.addf %5, %8 : vector<8x128xf32>
    %c0_10 = arith.constant 0 : index
    %c0_11 = arith.constant 0 : index
    %10 = vector.load %arg7[%c0_10, %c0_11] : memref<1x128xf32, #tpu.memory_space<vmem>>, vector<1x128xf32>
    %11 = vector.broadcast %10 : vector<1x128xf32> to vector<8x128xf32>
    %12 = arith.addf %9, %11 : vector<8x128xf32>
    %c0_12 = arith.constant 0 : index
    %c0_13 = arith.constant 0 : index
    %13 = vector.load %arg8[%c0_12, %c0_13] : memref<8x128xf32, #tpu.memory_space<vmem>>, vector<8x128xf32>
    tpu.vector_store %arg8[%c0_12, %c0_13], %12 {strides = array<i32>} : memref<8x128xf32, #tpu.memory_space<vmem>>, vector<8x128xf32>,
    return
  }
  func.func @transform_0(%arg0: i32, %arg1: i32) -> (i32, i32) {
    %c0_i32 = arith.constant 0 : i32
    %c0_i32_0 = arith.constant 0 : i32
    return %arg0, %c0_i32 : i32, i32
  }
  func.func @transform_1(%arg0: i32, %arg1: i32) -> (i32, i32) {
    %c0_i32 = arith.constant 0 : i32
    %c0_i32_0 = arith.constant 0 : i32
    return %arg1, %c0_i32 : i32, i32
  }
  func.func @transform_2(%arg0: i32, %arg1: i32) -> (i32, i32) {
    %c0_i32 = arith.constant 0 : i32
    %c0_i32_0 = arith.constant 0 : i32
    return %arg1, %c0_i32 : i32, i32
  }
  func.func @transform_3(%arg0: i32, %arg1: i32) -> (i32, i32) {
    %c0_i32 = arith.constant 0 : i32
    %c0_i32_0 = arith.constant 0 : i32
    return %arg0, %c0_i32 : i32, i32
  }
  func.func @transform_4(%arg0: i32, %arg1: i32) -> (i32, i32) {
    %c0_i32 = arith.constant 0 : i32
    %c0_i32_0 = arith.constant 0 : i32
    return %arg1, %c0_i32 : i32, i32
  }
  func.func @transform_5(%arg0: i32, %arg1: i32) -> (i32, i32) {
    %c0_i32 = arith.constant 0 : i32
    %c0_i32_0 = arith.constant 0 : i32
    return %c0_i32, %arg1 : i32, i32
  }
  func.func @transform_6(%arg0: i32, %arg1: i32) -> (i32, i32) {
    %c0_i32 = arith.constant 0 : i32
    return %arg0, %arg1 : i32, i32
  }
}

</mosaic_0001>

<llo_original>
// kernel: tpu_custom_call.1
$region0: #{tpu_custom_call.1}
  #allocation0 [shape = 'u32[]', space=smem, size = 0x4, offset = 0x4, fixed_abs, tag = 'smem constant byte address 0x4 - core index']
  #allocation1 [shape = 'u32[144,128]{1,0:T(1,128)}', space=vmem, size = 0x12000, scoped, tag = 'internal scratch']
  %s0 = inlined_call_operand.hbm [shape: f32[8,128], index: 0, kind: input, shape index: {}]
  %s1 = inlined_call_operand.hbm [shape: f32[128,128], index: 1, kind: input, shape index: {}]
  %s2 = inlined_call_operand.hbm [shape: s8[128,128], index: 2, kind: input, shape index: {}]
  %s3 = inlined_call_operand.vmem [shape: f32[8,128], index: 3, kind: input, shape index: {}]
  %s4 = inlined_call_operand.hbm [shape: f32[128,128], index: 4, kind: input, shape index: {}]
  %s5 = inlined_call_operand.vmem [shape: f32[1,128], index: 5, kind: input, shape index: {}]
  %s6 = inlined_call_operand.hbm [shape: f32[8,128], index: 6, kind: output, shape index: {}]
  %s7 = sld [smem:[#allocation0]]
  $region50: #{tpu_custom_call.1} parent=0
    _
  %s9 = ssub.s32 1, %s7
  %s10 = scalar_select 0, %s9, %s7
  $region1: #{tpu_custom_call.1} parent=0
    #allocation2 [shape = 'u8[4096]{0}', space=vmem, size = 0x1000, scoped, tag = 'input window, operand 0, single buffered']
    #allocation3 [shape = 's32[1]{0}', space=sflag, size = 0x4, scoped, tag = 'scoped memory for tpu_custom_call.1']
    #allocation4 [shape = 's32[1]{0}', space=sflag, size = 0x4, scoped, tag = 'scoped memory for tpu_custom_call.1']
    #allocation5 [shape = 'u8[65536]{0}', space=vmem, size = 0x10000, scoped, tag = 'input window, operand 1, single buffered']
    #allocation6 [shape = 's32[1]{0}', space=sflag, size = 0x4, scoped, tag = 'scoped memory for tpu_custom_call.1']
    #allocation7 [shape = 'u8[16384]{0}', space=vmem, size = 0x4000, scoped, tag = 'input window, operand 2, single buffered']
    #allocation8 [shape = 'u8[65536]{0}', space=vmem, size = 0x10000, scoped, tag = 'input window, operand 4, single buffered']
    #allocation9 [shape = 's32[1]{0}', space=sflag, size = 0x4, scoped, tag = 'scoped memory for tpu_custom_call.1']
    #allocation10 [shape = 'u8[4096]{0}', space=vmem, size = 0x1000, scoped, tag = 'output window, operand 0, single buffered']
    %11 = vsyncpa [#allocation3], 0
    %12 = vsyncpa [#allocation6], 0
    %13 = vsyncpa [#allocation9], 0
    %14 = vsyncpa [#allocation4], 0
    // Predicated region
    $region2: #{tpu_custom_call.1} parent=1 // pred_check
      _
    $region3: #{tpu_custom_call.1} parent=1 // pred_check_branch
      %16 = sbr.rel (0) target = $region5
    $region4: #{tpu_custom_call.1} parent=1 // pred_region
      %s18 = ssub.s32 128, 128
      %19 = vsyncadd [#allocation3], %s18
      %s21 = sshll.u32 [#allocation2], 4
      %s22 = int_to_ptr.vmem [resolvable:$true] %s21
      %24 = dma.hbm_to_vmem [thread:$0]  %s0, 128, %s22, [#allocation3]
    $region5: #{tpu_custom_call.1} parent=1 // pred_fallthru
      _
    // Predicated region
    $region6: #{tpu_custom_call.1} parent=1 // pred_check
      _
    $region7: #{tpu_custom_call.1} parent=1 // pred_check_branch
      %26 = sbr.rel (0) target = $region9
    $region8: #{tpu_custom_call.1} parent=1 // pred_region
      %s28 = ssub.s32 2048, 2048
      %29 = vsyncadd [#allocation6], %s28
      %s30 = sshll.u32 [#allocation5], 4
      %s31 = int_to_ptr.vmem [resolvable:$true] %s30
      %36 = dma.hbm_to_vmem [thread:$0]  %s1, 2048, %s31, [#allocation6], 128, 128, 8
    $region9: #{tpu_custom_call.1} parent=1 // pred_fallthru
      _
    // Predicated region
    $region10: #{tpu_custom_call.1} parent=1 // pred_check
      _
    $region11: #{tpu_custom_call.1} parent=1 // pred_check_branch
      %38 = sbr.rel (0) target = $region13
    $region12: #{tpu_custom_call.1} parent=1 // pred_region
      %s40 = ssub.s32 512, 512
      %41 = vsyncadd [#allocation6], %s40
      %s42 = sshll.u32 [#allocation7], 4
      %s43 = int_to_ptr.vmem [resolvable:$true] %s42
      %48 = dma.hbm_to_vmem [thread:$0]  %s2, 512, %s43, [#allocation6], 128, 128, 8
    $region13: #{tpu_custom_call.1} parent=1 // pred_fallthru
      _
    // Predicated region
    $region14: #{tpu_custom_call.1} parent=1 // pred_check
      _
    $region15: #{tpu_custom_call.1} parent=1 // pred_check_branch
      %50 = sbr.rel (0) target = $region17
    $region16: #{tpu_custom_call.1} parent=1 // pred_region
      _
    $region17: #{tpu_custom_call.1} parent=1 // pred_fallthru
      _
    // Predicated region
    $region18: #{tpu_custom_call.1} parent=1 // pred_check
      _
    $region19: #{tpu_custom_call.1} parent=1 // pred_check_branch
      %52 = sbr.rel (0) target = $region21
    $region20: #{tpu_custom_call.1} parent=1 // pred_region
      %s54 = ssub.s32 2048, 2048
      %55 = vsyncadd [#allocation9], %s54
      %s56 = sshll.u32 [#allocation8], 4
      %s57 = int_to_ptr.vmem [resolvable:$true] %s56
      %62 = dma.hbm_to_vmem [thread:$0]  %s4, 2048, %s57, [#allocation9], 128, 128, 8
    $region21: #{tpu_custom_call.1} parent=1 // pred_fallthru
      _
    // Predicated region
    $region22: #{tpu_custom_call.1} parent=1 // pred_check
      _
    $region23: #{tpu_custom_call.1} parent=1 // pred_check_branch
      %64 = sbr.rel (0) target = $region25
    $region24: #{tpu_custom_call.1} parent=1 // pred_region
      _
    $region25: #{tpu_custom_call.1} parent=1 // pred_fallthru
      _
    // Predicated region
    $region26: #{tpu_custom_call.1} parent=1 // pred_check
      _
    $region27: #{tpu_custom_call.1} parent=1 // pred_check_branch
      %66 = sbr.rel (0) target = $region29
    $region28: #{tpu_custom_call.1} parent=1 // pred_region
      %67 = dma.done [#allocation3], 128
    $region29: #{tpu_custom_call.1} parent=1 // pred_fallthru
      _
    // Predicated region
    $region30: #{tpu_custom_call.1} parent=1 // pred_check
      _
    $region31: #{tpu_custom_call.1} parent=1 // pred_check_branch
      %69 = sbr.rel (0) target = $region33
    $region32: #{tpu_custom_call.1} parent=1 // pred_region
      %70 = dma.done [#allocation6], 2048
    $region33: #{tpu_custom_call.1} parent=1 // pred_fallthru
      _
    // Predicated region
    $region34: #{tpu_custom_call.1} parent=1 // pred_check
      _
    $region35: #{tpu_custom_call.1} parent=1 // pred_check_branch
      %72 = sbr.rel (0) target = $region37
    $region36: #{tpu_custom_call.1} parent=1 // pred_region
      %73 = dma.done [#allocation6], 512
    $region37: #{tpu_custom_call.1} parent=1 // pred_fallthru
      _
    // Predicated region
    $region38: #{tpu_custom_call.1} parent=1 // pred_check
      _
    $region39: #{tpu_custom_call.1} parent=1 // pred_check_branch
      %75 = sbr.rel (0) target = $region41
    $region40: #{tpu_custom_call.1} parent=1 // pred_region
      %76 = dma.done [#allocation9], 2048
    $region41: #{tpu_custom_call.1} parent=1 // pred_fallthru
      _
    %v77 = vld [vmem:[#allocation5] sm:$0xff]
    %v78 = vld [vmem:[#allocation5 + $0x8] sm:$0xff]
    %v79 = vld [vmem:[#allocation5 + $0x10] sm:$0xff]
    %v80 = vld [vmem:[#allocation5 + $0x18] sm:$0xff]
    %v81 = vld [vmem:[#allocation5 + $0x20] sm:$0xff]
    %v82 = vld [vmem:[#allocation5 + $0x28] sm:$0xff]
    %v83 = vld [vmem:[#allocation5 + $0x30] sm:$0xff]
    %v84 = vld [vmem:[#allocation5 + $0x38] sm:$0xff]
    %v85 = vld [vmem:[#allocation5 + $0x40] sm:$0xff]
    %v86 = vld [vmem:[#allocation5 + $0x48] sm:$0xff]
    %v87 = vld [vmem:[#allocation5 + $0x50] sm:$0xff]
    %v88 = vld [vmem:[#allocation5 + $0x58] sm:$0xff]
    %v89 = vld [vmem:[#allocation5 + $0x60] sm:$0xff]
    %v90 = vld [vmem:[#allocation5 + $0x68] sm:$0xff]
    %v91 = vld [vmem:[#allocation5 + $0x70] sm:$0xff]
    %v92 = vld [vmem:[#allocation5 + $0x78] sm:$0xff]
    %v93 = vld [vmem:[#allocation7] sm:$0xff]
    %v94 = vld [vmem:[#allocation7 + $0x8] sm:$0xff]
    %v95 = vld [vmem:[#allocation7 + $0x10] sm:$0xff]
    %v96 = vld [vmem:[#allocation7 + $0x18] sm:$0xff]
    %v97 = vunpack.c.0.s8 %v93
    %v98 = vunpack.c.1.s8 %v93
    %v99 = vunpack.c.2.s8 %v93
    %v100 = vunpack.c.3.s8 %v93
    %v101 = vunpack.c.0.s8 %v94
    %v102 = vunpack.c.1.s8 %v94
    %v103 = vunpack.c.2.s8 %v94
    %v104 = vunpack.c.3.s8 %v94
    %v105 = vunpack.c.0.s8 %v95
    %v106 = vunpack.c.1.s8 %v95
    %v107 = vunpack.c.2.s8 %v95
    %v108 = vunpack.c.3.s8 %v95
    %v109 = vunpack.c.0.s8 %v96
    %v110 = vunpack.c.1.s8 %v96
    %v111 = vunpack.c.2.s8 %v96
    %v112 = vunpack.c.3.s8 %v96
    %v113 = vcvt.s32.f32 %v97
    %v114 = vcvt.s32.f32 %v98
    %v115 = vcvt.s32.f32 %v99
    %v116 = vcvt.s32.f32 %v100
    %v117 = vcvt.s32.f32 %v101
    %v118 = vcvt.s32.f32 %v102
    %v119 = vcvt.s32.f32 %v103
    %v120 = vcvt.s32.f32 %v104
    %v121 = vcvt.s32.f32 %v105
    %v122 = vcvt.s32.f32 %v106
    %v123 = vcvt.s32.f32 %v107
    %v124 = vcvt.s32.f32 %v108
    %v125 = vcvt.s32.f32 %v109
    %v126 = vcvt.s32.f32 %v110
    %v127 = vcvt.s32.f32 %v111
    %v128 = vcvt.s32.f32 %v112
    %v129 = vmul.f32 %v77, %v113
    %v130 = vmul.f32 %v78, %v114
    %v131 = vmul.f32 %v79, %v115
    %v132 = vmul.f32 %v80, %v116
    %v133 = vmul.f32 %v81, %v117
    %v134 = vmul.f32 %v82, %v118
    %v135 = vmul.f32 %v83, %v119
    %v136 = vmul.f32 %v84, %v120
    %v137 = vmul.f32 %v85, %v121
    %v138 = vmul.f32 %v86, %v122
    %v139 = vmul.f32 %v87, %v123
    %v140 = vmul.f32 %v88, %v124
    %v141 = vmul.f32 %v89, %v125
    %v142 = vmul.f32 %v90, %v126
    %v143 = vmul.f32 %v91, %v127
    %v144 = vmul.f32 %v92, %v128
    %v145 = vld [vmem:[#allocation2] sm:$0xff]
    %v146 = vld [vmem:[%s3] sm:$0xff]
    %v147 = vld [vmem:[#allocation8] sm:$0xff]
    %v148 = vld [vmem:[#allocation8 + $0x8] sm:$0xff]
    %v149 = vld [vmem:[#allocation8 + $0x10] sm:$0xff]
    %v150 = vld [vmem:[#allocation8 + $0x18] sm:$0xff]
    %v151 = vld [vmem:[#allocation8 + $0x20] sm:$0xff]
    %v152 = vld [vmem:[#allocation8 + $0x28] sm:$0xff]
    %v153 = vld [vmem:[#allocation8 + $0x30] sm:$0xff]
    %v154 = vld [vmem:[#allocation8 + $0x38] sm:$0xff]
    %v155 = vld [vmem:[#allocation8 + $0x40] sm:$0xff]
    %v156 = vld [vmem:[#allocation8 + $0x48] sm:$0xff]
    %v157 = vld [vmem:[#allocation8 + $0x50] sm:$0xff]
    %v158 = vld [vmem:[#allocation8 + $0x58] sm:$0xff]
    %v159 = vld [vmem:[#allocation8 + $0x60] sm:$0xff]
    %v160 = vld [vmem:[#allocation8 + $0x68] sm:$0xff]
    %v161 = vld [vmem:[#allocation8 + $0x70] sm:$0xff]
    %v162 = vld [vmem:[#allocation8 + $0x78] sm:$0xff]
    %163 = vmatprep.subr.mxu0 0.0
    %164 = vmatpush1.xpose.msra.mxu0 %v147
    %165 = vmatprep.subr.mxu0 0.0
    %166 = vmatpush1.xpose.msra.mxu0 %v148
    %167 = vmatprep.subr.mxu0 0.0
    %168 = vmatpush1.xpose.msra.mxu0 %v149
    %169 = vmatprep.subr.mxu0 0.0
    %170 = vmatpush1.xpose.msra.mxu0 %v150
    %171 = vmatprep.subr.mxu0 0.0
    %172 = vmatpush1.xpose.msra.mxu0 %v151
    %173 = vmatprep.subr.mxu0 0.0
    %174 = vmatpush1.xpose.msra.mxu0 %v152
    %175 = vmatprep.subr.mxu0 0.0
    %176 = vmatpush1.xpose.msra.mxu0 %v153
    %177 = vmatprep.subr.mxu0 0.0
    %178 = vmatpush1.xpose.msra.mxu0 %v154
    %179 = vmatprep.subr.mxu0 0.0
    %180 = vmatpush1.xpose.msra.mxu0 %v155
    %181 = vmatprep.subr.mxu0 0.0
    %182 = vmatpush1.xpose.msra.mxu0 %v156
    %183 = vmatprep.subr.mxu0 0.0
    %184 = vmatpush1.xpose.msra.mxu0 %v157
    %185 = vmatprep.subr.mxu0 0.0
    %186 = vmatpush1.xpose.msra.mxu0 %v158
    %187 = vmatprep.subr.mxu0 0.0
    %188 = vmatpush1.xpose.msra.mxu0 %v159
    %189 = vmatprep.subr.mxu0 0.0
    %190 = vmatpush1.xpose.msra.mxu0 %v160
    %191 = vmatprep.subr.mxu0 0.0
    %192 = vmatpush1.xpose.msra.mxu0 %v161
    %193 = vmatprep.subr.mxu0 0.0
    %194 = vmatpush1.xpose.msra.mxu0 %v162
    %195 = vmatprep.subr.mxu0 0.0
    %196 = vmatpush1.xpose.msra.mxu0 0.0
    %197 = vmatprep.subr.mxu0 0.0
    %198 = vmatpush1.xpose.msra.mxu0 0.0
    %199 = vmatprep.subr.mxu0 0.0
    %200 = vmatpush1.xpose.msra.mxu0 0.0
    %201 = vmatprep.subr.mxu0 0.0
    %202 = vmatpush1.xpose.msra.mxu0 0.0
    %203 = vmatprep.subr.mxu0 0.0
    %204 = vmatpush1.xpose.msra.mxu0 0.0
    %205 = vmatprep.subr.mxu0 0.0
    %206 = vmatpush1.xpose.msra.mxu0 0.0
    %207 = vmatprep.subr.mxu0 0.0
    %208 = vmatpush1.xpose.msra.mxu0 0.0
    %209 = vmatprep.subr.mxu0 0.0
    %210 = vmatpush1.xpose.msra.mxu0 0.0
    %211 = vmatprep.subr.mxu0 0.0
    %212 = vmatpush1.xpose.msra.mxu0 0.0
    %213 = vmatprep.subr.mxu0 0.0
    %214 = vmatpush1.xpose.msra.mxu0 0.0
    %215 = vmatprep.subr.mxu0 0.0
    %216 = vmatpush1.xpose.msra.mxu0 0.0
    %217 = vmatprep.subr.mxu0 0.0
    %218 = vmatpush1.xpose.msra.mxu0 0.0
    %219 = vmatprep.subr.mxu0 0.0
    %220 = vmatpush1.xpose.msra.mxu0 0.0
    %221 = vmatprep.subr.mxu0 0.0
    %222 = vmatpush1.xpose.msra.mxu0 0.0
    %223 = vmatprep.subr.mxu0 0.0
    %224 = vmatpush1.xpose.msra.mxu0 0.0
    %225 = vmatprep.subr.mxu0 0.0
    %226 = vmatpush1.xpose.msra.mxu0 0.0
    %227 = vmatprep.mubr.f32.mxu0 0.0
    %228 = vmatmul.mubr.f32.gmra.mrb[0].mxu0 %v146
    %v229 = vpop.f32.mrb[0].mxu0
    %v230 = vadd.f32 0.0, %v229
    %v231 = vpop.f32.mrb[0].mxu0
    %232 = vdwg.mxu0
    %233 = vmatprep.subr.mxu0 0.0
    %234 = vmatpush1.xpose.msra.mxu0 %v129
    %235 = vmatprep.subr.mxu0 0.0
    %236 = vmatpush1.xpose.msra.mxu0 %v130
    %237 = vmatprep.subr.mxu0 0.0
    %238 = vmatpush1.xpose.msra.mxu0 %v131
    %239 = vmatprep.subr.mxu0 0.0
    %240 = vmatpush1.xpose.msra.mxu0 %v132
    %241 = vmatprep.subr.mxu0 0.0
    %242 = vmatpush1.xpose.msra.mxu0 %v133
    %243 = vmatprep.subr.mxu0 0.0
    %244 = vmatpush1.xpose.msra.mxu0 %v134
    %245 = vmatprep.subr.mxu0 0.0
    %246 = vmatpush1.xpose.msra.mxu0 %v135
    %247 = vmatprep.subr.mxu0 0.0
    %248 = vmatpush1.xpose.msra.mxu0 %v136
    %249 = vmatprep.subr.mxu0 0.0
    %250 = vmatpush1.xpose.msra.mxu0 %v137
    %251 = vmatprep.subr.mxu0 0.0
    %252 = vmatpush1.xpose.msra.mxu0 %v138
    %253 = vmatprep.subr.mxu0 0.0
    %254 = vmatpush1.xpose.msra.mxu0 %v139
    %255 = vmatprep.subr.mxu0 0.0
    %256 = vmatpush1.xpose.msra.mxu0 %v140
    %257 = vmatprep.subr.mxu0 0.0
    %258 = vmatpush1.xpose.msra.mxu0 %v141
    %259 = vmatprep.subr.mxu0 0.0
    %260 = vmatpush1.xpose.msra.mxu0 %v142
    %261 = vmatprep.subr.mxu0 0.0
    %262 = vmatpush1.xpose.msra.mxu0 %v143
    %263 = vmatprep.subr.mxu0 0.0
    %264 = vmatpush1.xpose.msra.mxu0 %v144
    %265 = vmatprep.subr.mxu0 0.0
    %266 = vmatpush1.xpose.msra.mxu0 0.0
    %267 = vmatprep.subr.mxu0 0.0
    %268 = vmatpush1.xpose.msra.mxu0 0.0
    %269 = vmatprep.subr.mxu0 0.0
    %270 = vmatpush1.xpose.msra.mxu0 0.0
    %271 = vmatprep.subr.mxu0 0.0
    %272 = vmatpush1.xpose.msra.mxu0 0.0
    %273 = vmatprep.subr.mxu0 0.0
    %274 = vmatpush1.xpose.msra.mxu0 0.0
    %275 = vmatprep.subr.mxu0 0.0
    %276 = vmatpush1.xpose.msra.mxu0 0.0
    %277 = vmatprep.subr.mxu0 0.0
    %278 = vmatpush1.xpose.msra.mxu0 0.0
    %279 = vmatprep.subr.mxu0 0.0
    %280 = vmatpush1.xpose.msra.mxu0 0.0
    %281 = vmatprep.subr.mxu0 0.0
    %282 = vmatpush1.xpose.msra.mxu0 0.0
    %283 = vmatprep.subr.mxu0 0.0
    %284 = vmatpush1.xpose.msra.mxu0 0.0
    %285 = vmatprep.subr.mxu0 0.0
    %286 = vmatpush1.xpose.msra.mxu0 0.0
    %287 = vmatprep.subr.mxu0 0.0
    %288 = vmatpush1.xpose.msra.mxu0 0.0
    %289 = vmatprep.subr.mxu0 0.0
    %290 = vmatpush1.xpose.msra.mxu0 0.0
    %291 = vmatprep.subr.mxu0 0.0
    %292 = vmatpush1.xpose.msra.mxu0 0.0
    %293 = vmatprep.subr.mxu0 0.0
    %294 = vmatpush1.xpose.msra.mxu0 0.0
    %295 = vmatprep.subr.mxu0 0.0
    %296 = vmatpush1.xpose.msra.mxu0 0.0
    %297 = vmatprep.mubr.f32.mxu0 0.0
    %298 = vmatmul.mubr.f32.gmra.mrb[0].mxu0 %v145
    %v299 = vpop.f32.mrb[0].mxu0
    %v300 = vadd.f32 %v230, %v299
    %v301 = vpop.f32.mrb[0].mxu0
    %302 = vdwg.mxu0
    %v303 = vld [vmem:[%s5] sm:$0x1]
    %v305 = vlaneseq
    %v306 = vshrl.u32 %v305, 7
    %v307 = vsub.s32 0, %v306
    %v308 = vrot.slane %v303, %v307
    %v310 = vadd.f32 %v300, %v308
    %311 = vst [vmem:[#allocation10] sm:$0xff] %v310
    // Predicated region
    $region42: #{tpu_custom_call.1} parent=1 // pred_check
      _
    $region43: #{tpu_custom_call.1} parent=1 // pred_check_branch
      %313 = sbr.rel (0) target = $region45
    $region44: #{tpu_custom_call.1} parent=1 // pred_region
      %s315 = ssub.s32 128, 128
      %316 = vsyncadd [#allocation4], %s315
      %s318 = sshll.u32 [#allocation10], 4
      %s319 = int_to_ptr.vmem [resolvable:$true] %s318
      %321 = dma.vmem_to_hbm [thread:$0]  %s319, 128, %s6, [#allocation4]
    $region45: #{tpu_custom_call.1} parent=1 // pred_fallthru
      _
    // Predicated region
    $region46: #{tpu_custom_call.1} parent=1 // pred_check
      _
    $region47: #{tpu_custom_call.1} parent=1 // pred_check_branch
      %323 = sbr.rel (0) target = $region49
    $region48: #{tpu_custom_call.1} parent=1 // pred_region
      %324 = dma.done [#allocation4], 128
    $region49: #{tpu_custom_call.1} parent=1 // pred_fallthru
      _
    %325 = vsyncpa [#allocation3], 1
    %326 = vsyncpa [#allocation6], 1
    %327 = vsyncpa [#allocation9], 1
    %328 = vsyncpa [#allocation4], 1

</llo_original>
